<compile_context>
chip_gen: v5e
topology: v5e:2x2
jax: 0.10.0
libtpu: 0.0.40
codegen_flags: <defaults>
</compile_context>

<pallas_src>
import functools

import jax
import jax.numpy as jnp
import numpy as np
from jax.experimental import pallas as pl
from jax.experimental.pallas import tpu as pltpu


def _clip_loss_kernel(scale_ref, f1_ref, f2_ref, gidr_ref, gidc_ref,
                      invr_ref, invc_ref, wr_ref,
                      part_ref, mcol_ref, lcol_ref,
                      m_row, l_row, acc_row, acc_col):
    ki = pl.program_id(1)
    nk = pl.num_programs(1)

    # --- per-row-block init (row blocks are fully independent -> qi parallel) --
    @pl.when(ki == 0)
    def _():
        m_row[...] = jnp.full_like(m_row, -jnp.inf)
        l_row[...] = jnp.zeros_like(l_row)
        acc_row[...] = jnp.zeros_like(acc_row)
        acc_col[...] = jnp.zeros_like(acc_col)

    # --- logits tile: single bf16 MXU matmul, f32 accumulation, no transpose --
    scale = scale_ref[0, 0]
    s = scale * jax.lax.dot_general(
        f1_ref[...], f2_ref[...],
        dimension_numbers=(((1,), (1,)), ((), ())),
        preferred_element_type=jnp.float32)                     # (tq, tk)

    gid_r = gidr_ref[...]            # (tq, 1) int32
    gid_c = gidc_ref[...]            # (1, tk) int32
    inv_c = invc_ref[...]            # (1, tk) f32  == 1/sqrt(group size)

    # --- label-weighted logit term --------------------------------------------
    # sum_ij s*eq*(inv_r_i + inv_c_j): one select pass, then axis reductions
    # folded into small per-row / per-column accumulators (no dense pair_w tile,
    # no per-step scalar reduce).
    sm = jnp.where(gid_r == gid_c, s, 0.0)                      # (tq, tk)
    acc_row[...] += jnp.sum(sm, axis=1, keepdims=True)          # (tq, 1)
    acc_col[...] += jnp.sum(sm, axis=0, keepdims=True) * inv_c  # (1, tk)

    # --- online row logsumexp (softmax dim=1 of logits1) ----------------------
    m_new = jnp.maximum(m_row[...], jnp.max(s, axis=1, keepdims=True))
    p = jnp.exp(s - m_new)
    l_row[...] = l_row[...] * jnp.exp(m_row[...] - m_new) + jnp.sum(
        p, axis=1, keepdims=True)
    m_row[...] = m_new

    # --- per-block column logsumexp pieces (merged across row blocks on host) -
    # TODO(synk): reusing `p` with a rank-1 correction would drop one full-tile
    # EUP exp, but underflows columns whose in-tile max is >~88 below the tile
    # max (flagged in review); kept exact with a per-column shift.
    cm = jnp.max(s, axis=0, keepdims=True)                      # (1, tk)
    lc = jnp.sum(jnp.exp(s - cm), axis=0, keepdims=True)        # (1, tk)
    mcol_ref[...] = cm[None]                                    # (1, 1, tk)
    lcol_ref[...] = lc[None]

    # --- finalize this row block's partial scalar ------------------------------
    @pl.when(ki == nk - 1)
    def _():
        row_lse = m_row[...] + jnp.log(l_row[...])              # (tq, 1)
        part = (jnp.sum(row_lse * wr_ref[...])
                - jnp.sum(acc_row[...] * invr_ref[...])
                - jnp.sum(acc_col[...]))
        part_ref[...] = jnp.reshape(part, (1, 1, 1))


def _pick_tile(n, want, align):
    """Largest tile <= want that divides n and is `align`-aligned (or n itself)."""
    t = min(want, n)
    if n % t == 0 and (t % align == 0 or t == n):
        return t
    for cand in range(t, 0, -1):
        if n % cand == 0 and cand % align == 0:
            return cand
    return n


def clip_loss_pallas(text1_features, text2_features, gid, inv_norm, logit_scale,
                     *, tile_q=512, tile_k=512):
    """CLIP-style soft-cross-entropy loss (world_size == 1 path of ClipLoss)."""
    n, d = text1_features.shape
    tq = _pick_tile(n, tile_q, 8)     # sublane-dim tile
    tk = _pick_tile(n, tile_k, 128)   # lane-dim tile
    nqt, nkt = n // tq, n // tk

    # bf16 MXU inputs; accumulation stays f32 inside the kernel.
    f1 = text1_features.astype(jnp.bfloat16)
    f2 = text2_features.astype(jnp.bfloat16)
    gid = jnp.asarray(gid, jnp.int32)
    inv = jnp.asarray(inv_norm, jnp.float32)
    w = 1.0 / inv                                    # = sqrt(group size), host-side
    gid_row, gid_col = gid.reshape(n, 1), gid.reshape(1, n)
    inv_row, inv_col = inv.reshape(n, 1), inv.reshape(1, n)
    w_row = w.reshape(n, 1)
    scale = jnp.asarray(logit_scale, jnp.float32).reshape(1, 1)

    part, m_col_p, l_col_p = pl.pallas_call(
        _clip_loss_kernel,
        out_shape=(
            jax.ShapeDtypeStruct((nqt, 1, 1), jnp.float32),   # per-row-block scalar
            jax.ShapeDtypeStruct((nqt, 1, n), jnp.float32),   # per-row-block col max
            jax.ShapeDtypeStruct((nqt, 1, n), jnp.float32),   # per-row-block col sum-exp
        ),
        grid_spec=pltpu.PrefetchScalarGridSpec(
            num_scalar_prefetch=0,
            grid=(nqt, nkt),
            in_specs=[
                pl.BlockSpec(memory_space=pltpu.MemorySpace.SMEM),   # logit_scale
                pl.BlockSpec((tq, d), lambda qi, ki: (qi, 0)),       # f1 row tile
                pl.BlockSpec((tk, d), lambda qi, ki: (ki, 0)),       # f2 col tile
                pl.BlockSpec((tq, 1), lambda qi, ki: (qi, 0)),       # group ids (rows)
                pl.BlockSpec((1, tk), lambda qi, ki: (0, ki)),       # group ids (cols)
                pl.BlockSpec((tq, 1), lambda qi, ki: (qi, 0)),       # inv norms (rows)
                pl.BlockSpec((1, tk), lambda qi, ki: (0, ki)),       # inv norms (cols)
                pl.BlockSpec((tq, 1), lambda qi, ki: (qi, 0)),       # w = sqrt(group)
            ],
            out_specs=[
                pl.BlockSpec((1, 1, 1), lambda qi, ki: (qi, 0, 0)),
                pl.BlockSpec((1, 1, tk), lambda qi, ki: (qi, 0, ki)),
                pl.BlockSpec((1, 1, tk), lambda qi, ki: (qi, 0, ki)),
            ],
            scratch_shapes=[
                pltpu.VMEM((tq, 1), jnp.float32),    # row running max
                pltpu.VMEM((tq, 1), jnp.float32),    # row running sum-exp
                pltpu.VMEM((tq, 1), jnp.float32),    # row-weighted logit accumulator
                pltpu.VMEM((1, tk), jnp.float32),    # col-weighted logit accumulator
            ],
        ),
        compiler_params=pltpu.CompilerParams(
            # Row blocks are independent -> qi may shard across TensorCores
            # (v7x megacore); ki carries the online row-LSE reduction.
            dimension_semantics=("parallel", "arbitrary"),
            # TODO(synk): on v7x (64 MiB physical VMEM) keep tiles <= 512.
            vmem_limit_bytes=64 * 1024 * 1024,
        ),
        cost_estimate=pl.CostEstimate(
            flops=2 * n * n * d,
            transcendentals=2 * n * n,
            bytes_accessed=n * d * 2 * (1 + nqt) + 2 * nqt * n * 4,
        ),
    )(scale, f1, f2, gid_row, gid_col, inv_row, inv_col, w_row)

    # --- tiny exact JAX epilogue: associative column-LSE merge + final scale ---
    m_col_p = m_col_p[:, 0, :]                                   # (nqt, n)
    l_col_p = l_col_p[:, 0, :]
    m_col = jnp.max(m_col_p, axis=0)                             # (n,)
    l_col = jnp.sum(l_col_p * jnp.exp(m_col_p - m_col[None, :]), axis=0)
    col_lse = m_col + jnp.log(l_col)
    loss = (jnp.sum(part) + jnp.sum(col_lse * w)) * jnp.float32(0.5 / n)
    return loss


# ----------------------- host-side label preprocessing -----------------------
def preprocess_cui_lists(cui_lists):
    """cui strings -> (group_id int32[N], inv_col_norm f32[N]).

    Two items share a group id iff the reference label matrix has 1 at (i, j)
    (identical CUI starting with 'C'); everything else is a singleton.
    inv_col_norm[j] = 1/sqrt(group size) = value F.normalize(labels, 0) writes.
    """
    n = len(cui_lists)
    gid = np.empty((n,), dtype=np.int64)
    table = {}
    for i, cui in enumerate(cui_lists):
        if len(cui) > 0 and cui[0] == 'C':
            gid[i] = table.setdefault(cui, len(table))
        else:
            gid[i] = n + i                       # unique singleton id
    _, inv_idx, counts = np.unique(gid, return_inverse=True, return_counts=True)
    inv_norm = 1.0 / np.sqrt(counts[inv_idx].astype(np.float32))
    return gid.astype(np.int32), inv_norm.astype(np.float32)


def dense_labels(cui_lists):
    """Exact replica of ClipLoss.get_labels (reference only)."""
    n = len(cui_lists)
    labels = np.eye(n, dtype=np.float32)
    for i in range(n):
        for j in range(i, n):
            if cui_lists[i] == cui_lists[j] and cui_lists[i][0] == 'C':
                labels[i, j] = 1.0
                labels[j, i] = 1.0
    norms = np.sqrt(np.sum(labels * labels, axis=0, keepdims=True))
    return jnp.asarray(labels / np.maximum(norms, 1e-12), jnp.float32)


def clip_loss_reference(f1, f2, labels, logit_scale):
    """Pure-JAX replica of ClipLoss.forward (world_size == 1)."""
    f1 = f1.astype(jnp.float32)
    f2 = f2.astype(jnp.float32)
    logits1 = logit_scale * f1 @ f2.T
    logits2 = logit_scale * f2 @ f1.T

    def sce(logits, target):
        ll = -jax.nn.log_softmax(logits, axis=1)
        return jnp.sum(ll * target) / logits.shape[0]

    return 0.5 * (sce(logits1, labels) + sce(logits2, labels))


if __name__ == "__main__":
    key = jax.random.PRNGKey(0)
    k1, k2, k3, k4 = jax.random.split(key, 4)
    scale = jnp.float32(1.0 / 0.07)

    def normalize(x):
        return x / jnp.linalg.norm(x, axis=-1, keepdims=True)

    # Case 1: tiny single-tile (N=8, D=32), grid (1, 1).
    N1, D1 = 8, 32
    a1 = normalize(jax.random.normal(k1, (N1, D1), jnp.float32))
    b1 = normalize(jax.random.normal(k2, (N1, D1), jnp.float32))
    cui1 = ['C001', 'C002', 'C001', 'D003', 'C002', 'C004', 'E005', 'C001']
    gid1, inv1 = preprocess_cui_lists(cui1)
    loss1 = clip_loss_pallas(a1, b1, gid1, inv1, scale)
    jax.block_until_ready(loss1)
    ref1 = clip_loss_reference(a1.astype(jnp.bfloat16), b1.astype(jnp.bfloat16),
                               dense_labels(cui1), scale)
    np.testing.assert_allclose(np.asarray(loss1), np.asarray(ref1),
                               rtol=5e-3, atol=1e-2)

    # Case 2: multi-tile path (N=512, D=128), tiles 256 -> grid (2, 2); exercises
    # the per-row-block partials + column-LSE merge epilogue.
    N2, D2 = 512, 128
    a2 = normalize(jax.random.normal(k3, (N2, D2), jnp.float32))
    b2 = normalize(jax.random.normal(k4, (N2, D2), jnp.float32))
    cui2 = [f"C{(i * 7) % 40:03d}" if i % 3 else f"D{i:03d}" for i in range(N2)]
    gid2, inv2 = preprocess_cui_lists(cui2)
    loss2 = clip_loss_pallas(a2, b2, gid2, inv2, scale, tile_q=256, tile_k=256)
    jax.block_until_ready(loss2)
    ref2 = clip_loss_reference(a2.astype(jnp.bfloat16), b2.astype(jnp.bfloat16),
                               dense_labels(cui2), scale)
    np.testing.assert_allclose(np.asarray(loss2), np.asarray(ref2),
                               rtol=5e-3, atol=1e-2)

    print("KERNEL_OK")
</pallas_src>

<mosaic_0001>
module attributes {stable_mosaic.version = 11 : i64} {
  func.func @_clip_loss_kernel(%arg0: i32, %arg1: i32, %arg2: memref<1x1xf32, #tpu.memory_space<smem>>, %arg3: memref<8x32xbf16, #tpu.memory_space<vmem>>, %arg4: memref<8x32xbf16, #tpu.memory_space<vmem>>, %arg5: memref<8x1xi32, #tpu.memory_space<vmem>>, %arg6: memref<1x8xi32, #tpu.memory_space<vmem>>, %arg7: memref<8x1xf32, #tpu.memory_space<vmem>>, %arg8: memref<1x8xf32, #tpu.memory_space<vmem>>, %arg9: memref<8x1xf32, #tpu.memory_space<vmem>>, %arg10: memref<1x1x1xf32, #tpu.memory_space<vmem>>, %arg11: memref<1x1x8xf32, #tpu.memory_space<vmem>>, %arg12: memref<1x1x8xf32, #tpu.memory_space<vmem>>, %arg13: memref<8x1xf32, #tpu.memory_space<vmem>>, %arg14: memref<8x1xf32, #tpu.memory_space<vmem>>, %arg15: memref<8x1xf32, #tpu.memory_space<vmem>>, %arg16: memref<1x8xf32, #tpu.memory_space<vmem>>) attributes {dimension_semantics = [#tpu.dimension_semantics<parallel>, #tpu.dimension_semantics<arbitrary>], iteration_bounds = array<i64: 1, 1>, scalar_prefetch = 0 : i64, scratch_operands = 4 : i64, tpu.core_type = #tpu.core_type<tc>, window_params = [{transform_indices = @transform_0, window_bounds = array<i64: 1, 1>}, {transform_indices = @transform_1, window_bounds = array<i64: 8, 32>}, {transform_indices = @transform_2, window_bounds = array<i64: 8, 32>}, {transform_indices = @transform_3, window_bounds = array<i64: 8, 1>}, {transform_indices = @transform_4, window_bounds = array<i64: 1, 8>}, {transform_indices = @transform_5, window_bounds = array<i64: 8, 1>}, {transform_indices = @transform_6, window_bounds = array<i64: 1, 8>}, {transform_indices = @transform_7, window_bounds = array<i64: 8, 1>}, {transform_indices = @transform_8, window_bounds = array<i64: 1, 1, 1>}, {transform_indices = @transform_9, window_bounds = array<i64: 1, 1, 8>}, {transform_indices = @transform_10, window_bounds = array<i64: 1, 1, 8>}]} {
    %c0_i32 = arith.constant 0 : i32
    %0 = arith.cmpi eq, %arg1, %c0_i32 : i32
    %1 = arith.extui %0 : i1 to i32
    %c0_i32_0 = arith.constant 0 : i32
    %2 = arith.cmpi ne, %1, %c0_i32_0 : i32
    scf.if %2 {
      %cst_45 = arith.constant 0xFF800000 : f32
      %59 = vector.broadcast %cst_45 : f32 to vector<8x1xf32>
      %c0_46 = arith.constant 0 : index
      %c0_47 = arith.constant 0 : index
      %60 = vector.load %arg13[%c0_46, %c0_47] : memref<8x1xf32, #tpu.memory_space<vmem>>, vector<8x1xf32>
      tpu.vector_store %arg13[%c0_46, %c0_47], %59 {strides = array<i32>} : memref<8x1xf32, #tpu.memory_space<vmem>>, vector<8x1xf32>,
      %cst_48 = arith.constant 0.000000e+00 : f32
      %61 = vector.broadcast %cst_48 : f32 to vector<8x1xf32>
      %c0_49 = arith.constant 0 : index
      %c0_50 = arith.constant 0 : index
      %62 = vector.load %arg14[%c0_49, %c0_50] : memref<8x1xf32, #tpu.memory_space<vmem>>, vector<8x1xf32>
      tpu.vector_store %arg14[%c0_49, %c0_50], %61 {strides = array<i32>} : memref<8x1xf32, #tpu.memory_space<vmem>>, vector<8x1xf32>,
      %cst_51 = arith.constant 0.000000e+00 : f32
      %63 = vector.broadcast %cst_51 : f32 to vector<8x1xf32>
      %c0_52 = arith.constant 0 : index
      %c0_53 = arith.constant 0 : index
      %64 = vector.load %arg15[%c0_52, %c0_53] : memref<8x1xf32, #tpu.memory_space<vmem>>, vector<8x1xf32>
      tpu.vector_store %arg15[%c0_52, %c0_53], %63 {strides = array<i32>} : memref<8x1xf32, #tpu.memory_space<vmem>>, vector<8x1xf32>,
      %cst_54 = arith.constant 0.000000e+00 : f32
      %65 = vector.broadcast %cst_54 : f32 to vector<1x8xf32>
      %c0_55 = arith.constant 0 : index
      %c0_56 = arith.constant 0 : index
      %66 = vector.load %arg16[%c0_55, %c0_56] : memref<1x8xf32, #tpu.memory_space<vmem>>, vector<1x8xf32>
      tpu.vector_store %arg16[%c0_55, %c0_56], %65 {strides = array<i32>} : memref<1x8xf32, #tpu.memory_space<vmem>>, vector<1x8xf32>,
    } else {
    }
    %c0 = arith.constant 0 : index
    %c0_1 = arith.constant 0 : index
    %3 = memref.load %arg2[%c0, %c0_1] : memref<1x1xf32, #tpu.memory_space<smem>>
    %c0_2 = arith.constant 0 : index
    %c0_3 = arith.constant 0 : index
    %4 = vector.load %arg3[%c0_2, %c0_3] : memref<8x32xbf16, #tpu.memory_space<vmem>>, vector<8x32xbf16>
    %c0_4 = arith.constant 0 : index
    %c0_5 = arith.constant 0 : index
    %5 = vector.load %arg4[%c0_4, %c0_5] : memref<8x32xbf16, #tpu.memory_space<vmem>>, vector<8x32xbf16>
    %cst = arith.constant dense<0.000000e+00> : vector<8x8xf32>
    %6 = tpu.matmul %4, %5, %cst {dimension_numbers = #tpu.dot_dimension_numbers<[1], [1], [0], [0], [0, 0, 1, 0], [], []>} : vector<8x32xbf16>, vector<8x32xbf16>, vector<8x8xf32> -> vector<8x8xf32>
    %7 = vector.broadcast %3 : f32 to vector<8x8xf32>
    %8 = arith.mulf %7, %6 : vector<8x8xf32>
    %c0_6 = arith.constant 0 : index
    %c0_7 = arith.constant 0 : index
    %9 = vector.load %arg5[%c0_6, %c0_7] : memref<8x1xi32, #tpu.memory_space<vmem>>, vector<8x1xi32>
    %c0_8 = arith.constant 0 : index
    %c0_9 = arith.constant 0 : index
    %10 = vector.load %arg6[%c0_8, %c0_9] : memref<1x8xi32, #tpu.memory_space<vmem>>, vector<1x8xi32>
    %c0_10 = arith.constant 0 : index
    %c0_11 = arith.constant 0 : index
    %11 = vector.load %arg8[%c0_10, %c0_11] : memref<1x8xf32, #tpu.memory_space<vmem>>, vector<1x8xf32>
    %12 = vector.broadcast %9 : vector<8x1xi32> to vector<8x8xi32>
    %13 = vector.broadcast %10 : vector<1x8xi32> to vector<8x8xi32>
    %14 = arith.cmpi eq, %12, %13 : vector<8x8xi32>
    %cst_12 = arith.constant 0.000000e+00 : f32
    %15 = vector.broadcast %cst_12 : f32 to vector<8x8xf32>
    %16 = arith.select %14, %8, %15 : vector<8x8xi1>, vector<8x8xf32>
    %c0_13 = arith.constant 0 : index
    %c0_14 = arith.constant 0 : index
    %17 = vector.load %arg15[%c0_13, %c0_14] : memref<8x1xf32, #tpu.memory_space<vmem>>, vector<8x1xf32>
    %cst_15 = arith.constant dense<0.000000e+00> : vector<8xf32>
    %18 = vector.multi_reduction <add>, %16, %cst_15 [1] : vector<8x8xf32> to vector<8xf32>
    %19 = vector.shape_cast %18 : vector<8xf32> to vector<8x1xf32>
    %20 = arith.addf %17, %19 : vector<8x1xf32>
    %c0_16 = arith.constant 0 : index
    %c0_17 = arith.constant 0 : index
    %21 = vector.load %arg15[%c0_16, %c0_17] : memref<8x1xf32, #tpu.memory_space<vmem>>, vector<8x1xf32>
    tpu.vector_store %arg15[%c0_16, %c0_17], %20 {strides = array<i32>} : memref<8x1xf32, #tpu.memory_space<vmem>>, vector<8x1xf32>,
    %c0_18 = arith.constant 0 : index
    %c0_19 = arith.constant 0 : index
    %22 = vector.load %arg16[%c0_18, %c0_19] : memref<1x8xf32, #tpu.memory_space<vmem>>, vector<1x8xf32>
    %cst_20 = arith.constant dense<0.000000e+00> : vector<8xf32>
    %23 = vector.multi_reduction <add>, %16, %cst_20 [0] : vector<8x8xf32> to vector<8xf32>
    %24 = vector.shape_cast %23 : vector<8xf32> to vector<1x8xf32>
    %25 = arith.mulf %24, %11 : vector<1x8xf32>
    %26 = arith.addf %22, %25 : vector<1x8xf32>
    %c0_21 = arith.constant 0 : index
    %c0_22 = arith.constant 0 : index
    %27 = vector.load %arg16[%c0_21, %c0_22] : memref<1x8xf32, #tpu.memory_space<vmem>>, vector<1x8xf32>
    tpu.vector_store %arg16[%c0_21, %c0_22], %26 {strides = array<i32>} : memref<1x8xf32, #tpu.memory_space<vmem>>, vector<1x8xf32>,
    %c0_23 = arith.constant 0 : index
    %c0_24 = arith.constant 0 : index
    %28 = vector.load %arg13[%c0_23, %c0_24] : memref<8x1xf32, #tpu.memory_space<vmem>>, vector<8x1xf32>
    %cst_25 = arith.constant dense<0xFF800000> : vector<8xf32>
    %29 = vector.multi_reduction <maximumf>, %8, %cst_25 [1] : vector<8x8xf32> to vector<8xf32>
    %30 = vector.shape_cast %29 : vector<8xf32> to vector<8x1xf32>
    %31 = arith.maximumf %28, %30 : vector<8x1xf32>
    %32 = vector.broadcast %31 : vector<8x1xf32> to vector<8x8xf32>
    %33 = arith.subf %8, %32 : vector<8x8xf32>
    %34 = math.exp %33 : vector<8x8xf32>
    %c0_26 = arith.constant 0 : index
    %c0_27 = arith.constant 0 : index
    %35 = vector.load %arg14[%c0_26, %c0_27] : memref<8x1xf32, #tpu.memory_space<vmem>>, vector<8x1xf32>
    %c0_28 = arith.constant 0 : index
    %c0_29 = arith.constant 0 : index
    %36 = vector.load %arg13[%c0_28, %c0_29] : memref<8x1xf32, #tpu.memory_space<vmem>>, vector<8x1xf32>
    %37 = arith.subf %36, %31 : vector<8x1xf32>
    %38 = math.exp %37 : vector<8x1xf32>
    %39 = arith.mulf %35, %38 : vector<8x1xf32>
    %cst_30 = arith.constant dense<0.000000e+00> : vector<8xf32>
    %40 = vector.multi_reduction <add>, %34, %cst_30 [1] : vector<8x8xf32> to vector<8xf32>
    %41 = vector.shape_cast %40 : vector<8xf32> to vector<8x1xf32>
    %42 = arith.addf %39, %41 : vector<8x1xf32>
    %c0_31 = arith.constant 0 : index
    %c0_32 = arith.constant 0 : index
    %43 = vector.load %arg14[%c0_31, %c0_32] : memref<8x1xf32, #tpu.memory_space<vmem>>, vector<8x1xf32>
    tpu.vector_store %arg14[%c0_31, %c0_32], %42 {strides = array<i32>} : memref<8x1xf32, #tpu.memory_space<vmem>>, vector<8x1xf32>,
    %c0_33 = arith.constant 0 : index
    %c0_34 = arith.constant 0 : index
    %44 = vector.load %arg13[%c0_33, %c0_34] : memref<8x1xf32, #tpu.memory_space<vmem>>, vector<8x1xf32>
    tpu.vector_store %arg13[%c0_33, %c0_34], %31 {strides = array<i32>} : memref<8x1xf32, #tpu.memory_space<vmem>>, vector<8x1xf32>,
    %cst_35 = arith.constant dense<0xFF800000> : vector<8xf32>
    %45 = vector.multi_reduction <maximumf>, %8, %cst_35 [0] : vector<8x8xf32> to vector<8xf32>
    %46 = vector.shape_cast %45 : vector<8xf32> to vector<1x8xf32>
    %47 = vector.broadcast %46 : vector<1x8xf32> to vector<8x8xf32>
    %48 = arith.subf %8, %47 : vector<8x8xf32>
    %49 = math.exp %48 : vector<8x8xf32>
    %cst_36 = arith.constant dense<0.000000e+00> : vector<8xf32>
    %50 = vector.multi_reduction <add>, %49, %cst_36 [0] : vector<8x8xf32> to vector<8xf32>
    %51 = vector.shape_cast %50 : vector<8xf32> to vector<1x8xf32>
    %52 = vector.shape_cast %46 : vector<1x8xf32> to vector<1x1x8xf32>
    %c0_37 = arith.constant 0 : index
    %c0_38 = arith.constant 0 : index
    %c0_39 = arith.constant 0 : index
    %53 = vector.load %arg11[%c0_37, %c0_38, %c0_39] : memref<1x1x8xf32, #tpu.memory_space<vmem>>, vector<1x1x8xf32>
    tpu.vector_store %arg11[%c0_37, %c0_38, %c0_39], %52 {strides = array<i32>} : memref<1x1x8xf32, #tpu.memory_space<vmem>>, vector<1x1x8xf32>,
    %54 = vector.shape_cast %51 : vector<1x8xf32> to vector<1x1x8xf32>
    %c0_40 = arith.constant 0 : index
    %c0_41 = arith.constant 0 : index
    %c0_42 = arith.constant 0 : index
    %55 = vector.load %arg12[%c0_40, %c0_41, %c0_42] : memref<1x1x8xf32, #tpu.memory_space<vmem>>, vector<1x1x8xf32>
    tpu.vector_store %arg12[%c0_40, %c0_41, %c0_42], %54 {strides = array<i32>} : memref<1x1x8xf32, #tpu.memory_space<vmem>>, vector<1x1x8xf32>,
    %c0_i32_43 = arith.constant 0 : i32
    %56 = arith.cmpi eq, %arg1, %c0_i32_43 : i32
    %57 = arith.extui %56 : i1 to i32
    %c0_i32_44 = arith.constant 0 : i32
    %58 = arith.cmpi ne, %57, %c0_i32_44 : i32
    scf.if %58 {
      %c0_45 = arith.constant 0 : index
      %c0_46 = arith.constant 0 : index
      %59 = vector.load %arg13[%c0_45, %c0_46] : memref<8x1xf32, #tpu.memory_space<vmem>>, vector<8x1xf32>
      %c0_47 = arith.constant 0 : index
      %c0_48 = arith.constant 0 : index
      %60 = vector.load %arg14[%c0_47, %c0_48] : memref<8x1xf32, #tpu.memory_space<vmem>>, vector<8x1xf32>
      %61 = math.log %60 : vector<8x1xf32>
      %62 = arith.addf %59, %61 : vector<8x1xf32>
      %c0_49 = arith.constant 0 : index
      %c0_50 = arith.constant 0 : index
      %63 = vector.load %arg9[%c0_49, %c0_50] : memref<8x1xf32, #tpu.memory_space<vmem>>, vector<8x1xf32>
      %64 = arith.mulf %62, %63 : vector<8x1xf32>
      %65 = vector.shape_cast %64 : vector<8x1xf32> to vector<1x8x1xf32>
      %cst_51 = arith.constant dense<0.000000e+00> : vector<1xf32>
      %66 = vector.multi_reduction <add>, %65, %cst_51 [1, 2] : vector<1x8x1xf32> to vector<1xf32>
      %67 = vector.shape_cast %66 : vector<1xf32> to vector<1x1x1xf32>
      %68 = vector.extract %67[0, 0, 0] : f32 from vector<1x1x1xf32>
      %c0_52 = arith.constant 0 : index
      %c0_53 = arith.constant 0 : index
      %69 = vector.load %arg15[%c0_52, %c0_53] : memref<8x1xf32, #tpu.memory_space<vmem>>, vector<8x1xf32>
      %c0_54 = arith.constant 0 : index
      %c0_55 = arith.constant 0 : index
      %70 = vector.load %arg7[%c0_54, %c0_55] : memref<8x1xf32, #tpu.memory_space<vmem>>, vector<8x1xf32>
      %71 = arith.mulf %69, %70 : vector<8x1xf32>
      %72 = vector.shape_cast %71 : vector<8x1xf32> to vector<1x8x1xf32>
      %cst_56 = arith.constant dense<0.000000e+00> : vector<1xf32>
      %73 = vector.multi_reduction <add>, %72, %cst_56 [1, 2] : vector<1x8x1xf32> to vector<1xf32>
      %74 = vector.shape_cast %73 : vector<1xf32> to vector<1x1x1xf32>
      %75 = vector.extract %74[0, 0, 0] : f32 from vector<1x1x1xf32>
      %76 = arith.subf %68, %75 : f32
      %c0_57 = arith.constant 0 : index
      %c0_58 = arith.constant 0 : index
      %77 = vector.load %arg16[%c0_57, %c0_58] : memref<1x8xf32, #tpu.memory_space<vmem>>, vector<1x8xf32>
      %78 = vector.shape_cast %77 : vector<1x8xf32> to vector<1x1x8xf32>
      %cst_59 = arith.constant dense<0.000000e+00> : vector<1xf32>
      %79 = vector.multi_reduction <add>, %78, %cst_59 [1, 2] : vector<1x1x8xf32> to vector<1xf32>
      %80 = vector.shape_cast %79 : vector<1xf32> to vector<1x1x1xf32>
      %81 = vector.extract %80[0, 0, 0] : f32 from vector<1x1x1xf32>
      %82 = arith.subf %76, %81 : f32
      %83 = vector.broadcast %82 : f32 to vector<1x1x1xf32>
      %c0_60 = arith.constant 0 : index
      %c0_61 = arith.constant 0 : index
      %c0_62 = arith.constant 0 : index
      %84 = vector.load %arg10[%c0_60, %c0_61, %c0_62] : memref<1x1x1xf32, #tpu.memory_space<vmem>>, vector<1x1x1xf32>
      tpu.vector_store %arg10[%c0_60, %c0_61, %c0_62], %83 {strides = array<i32>} : memref<1x1x1xf32, #tpu.memory_space<vmem>>, vector<1x1x1xf32>,
    } else {
    }
    return
  }
  func.func @transform_0(%arg0: i32, %arg1: i32) -> (i32, i32) {
    %c0_i32 = arith.constant 0 : i32
    %c0_i32_0 = arith.constant 0 : i32
    %c0_i32_1 = arith.constant 0 : i32
    return %c0_i32, %c0_i32_0 : i32, i32
  }
  func.func @transform_1(%arg0: i32, %arg1: i32) -> (i32, i32) {
    %c0_i32 = arith.constant 0 : i32
    %c0_i32_0 = arith.constant 0 : i32
    return %arg0, %c0_i32 : i32, i32
  }
  func.func @transform_2(%arg0: i32, %arg1: i32) -> (i32, i32) {
    %c0_i32 = arith.constant 0 : i32
    %c0_i32_0 = arith.constant 0 : i32
    return %arg1, %c0_i32 : i32, i32
  }
  func.func @transform_3(%arg0: i32, %arg1: i32) -> (i32, i32) {
    %c0_i32 = arith.constant 0 : i32
    %c0_i32_0 = arith.constant 0 : i32
    return %arg0, %c0_i32 : i32, i32
  }
  func.func @transform_4(%arg0: i32, %arg1: i32) -> (i32, i32) {
    %c0_i32 = arith.constant 0 : i32
    %c0_i32_0 = arith.constant 0 : i32
    return %c0_i32, %arg1 : i32, i32
  }
  func.func @transform_5(%arg0: i32, %arg1: i32) -> (i32, i32) {
    %c0_i32 = arith.constant 0 : i32
    %c0_i32_0 = arith.constant 0 : i32
    return %arg0, %c0_i32 : i32, i32
  }
  func.func @transform_6(%arg0: i32, %arg1: i32) -> (i32, i32) {
    %c0_i32 = arith.constant 0 : i32
    %c0_i32_0 = arith.constant 0 : i32
    return %c0_i32, %arg1 : i32, i32
  }
  func.func @transform_7(%arg0: i32, %arg1: i32) -> (i32, i32) {
    %c0_i32 = arith.constant 0 : i32
    %c0_i32_0 = arith.constant 0 : i32
    return %arg0, %c0_i32 : i32, i32
  }
  func.func @transform_8(%arg0: i32, %arg1: i32) -> (i32, i32, i32) {
    %c0_i32 = arith.constant 0 : i32
    %c0_i32_0 = arith.constant 0 : i32
    %c0_i32_1 = arith.constant 0 : i32
    return %arg0, %c0_i32, %c0_i32_0 : i32, i32, i32
  }
  func.func @transform_9(%arg0: i32, %arg1: i32) -> (i32, i32, i32) {
    %c0_i32 = arith.constant 0 : i32
    %c0_i32_0 = arith.constant 0 : i32
    return %arg0, %c0_i32, %arg1 : i32, i32, i32
  }
  func.func @transform_10(%arg0: i32, %arg1: i32) -> (i32, i32, i32) {
    %c0_i32 = arith.constant 0 : i32
    %c0_i32_0 = arith.constant 0 : i32
    return %arg0, %c0_i32, %arg1 : i32, i32, i32
  }
}

</mosaic_0001>

<llo_original>
// kernel: tpu_custom_call.1
$region0: #{tpu_custom_call.1}
  #allocation0 [shape = 'u32[]', space=smem, size = 0x4, offset = 0x4, fixed_abs, tag = 'smem constant byte address 0x4 - core index']
  #allocation1 [shape = 'u32[72,128]{1,0:T(1,128)}', space=vmem, size = 0x9000, scoped, tag = 'internal scratch']
  #allocation2 [shape = 'f32[8,1]{1,0:T(8,128)}', space=vmem, size = 0x1000, scoped, tag = 'scratch operand']
  #allocation3 [shape = 'f32[8,1]{1,0:T(8,128)}', space=vmem, size = 0x1000, scoped, tag = 'scratch operand']
  #allocation4 [shape = 'f32[8,1]{1,0:T(8,128)}', space=vmem, size = 0x1000, scoped, tag = 'scratch operand']
  #allocation5 [shape = 'f32[1,8]{1,0:T(1,128)}', space=vmem, size = 0x200, scoped, tag = 'scratch operand']
  #allocation6 [shape = 'f32[1,1]{1,0:T(1,128)S(6)}', space=smem, size = 0x200, scoped, tag = 'scoped memory for tpu_custom_call.1']
  %s0 = inlined_call_operand.<no memory space> [shape: f32[1,1], index: 0, kind: input, shape index: {}]
  %s1 = inlined_call_operand.vmem [shape: bf16[8,32], index: 1, kind: input, shape index: {}]
  %s2 = inlined_call_operand.vmem [shape: bf16[8,32], index: 2, kind: input, shape index: {}]
  %s3 = inlined_call_operand.vmem [shape: s32[8,1], index: 3, kind: input, shape index: {}]
  %s4 = inlined_call_operand.vmem [shape: s32[1,8], index: 4, kind: input, shape index: {}]
  %s5 = inlined_call_operand.vmem [shape: f32[8,1], index: 5, kind: input, shape index: {}]
  %s6 = inlined_call_operand.vmem [shape: f32[1,8], index: 6, kind: input, shape index: {}]
  %s7 = inlined_call_operand.vmem [shape: f32[8,1], index: 7, kind: input, shape index: {}]
  %s8 = inlined_call_operand.hbm [shape: f32[1,1,1], index: 8, kind: output, shape index: {0}]
  %s9 = inlined_call_operand.hbm [shape: f32[1,1,8], index: 9, kind: output, shape index: {1}]
  %s10 = inlined_call_operand.hbm [shape: f32[1,1,8], index: 10, kind: output, shape index: {2}]
  %11 = xla_tuple %s8, %s9, %s10
  %s12 = sld [smem:[#allocation0]]
  $region66: #{tpu_custom_call.1} parent=0
    _
  %s14 = ssub.s32 1, %s12
  %s15 = scalar_select 0, %s14, %s12
  %16 = sst [smem:[#allocation6]] %s0
  $region1: #{tpu_custom_call.1} parent=0
    #allocation7 [shape = 'u8[512]{0}', space=vmem, size = 0x400, scoped, tag = 'output window, operand 0, single buffered']
    #allocation8 [shape = 's32[1]{0}', space=sflag, size = 0x4, scoped, tag = 'scoped memory for tpu_custom_call.1']
    #allocation9 [shape = 'u8[512]{0}', space=vmem, size = 0x400, scoped, tag = 'output window, operand 1, single buffered']
    #allocation10 [shape = 's32[1]{0}', space=sflag, size = 0x4, scoped, tag = 'scoped memory for tpu_custom_call.1']
    #allocation11 [shape = 'u8[512]{0}', space=vmem, size = 0x400, scoped, tag = 'output window, operand 2, single buffered']
    %17 = vsyncpa [#allocation8], 0
    %18 = vsyncpa [#allocation10], 0
    // Predicated region
    $region2: #{tpu_custom_call.1} parent=1 // pred_check
      _
    $region3: #{tpu_custom_call.1} parent=1 // pred_check_branch
      %20 = sbr.rel (0) target = $region5
    $region4: #{tpu_custom_call.1} parent=1 // pred_region
      _
    $region5: #{tpu_custom_call.1} parent=1 // pred_fallthru
      _
    // Predicated region
    $region6: #{tpu_custom_call.1} parent=1 // pred_check
      _
    $region7: #{tpu_custom_call.1} parent=1 // pred_check_branch
      %22 = sbr.rel (0) target = $region9
    $region8: #{tpu_custom_call.1} parent=1 // pred_region
      _
    $region9: #{tpu_custom_call.1} parent=1 // pred_fallthru
      _
    // Predicated region
    $region10: #{tpu_custom_call.1} parent=1 // pred_check
      _
    $region11: #{tpu_custom_call.1} parent=1 // pred_check_branch
      %24 = sbr.rel (0) target = $region13
    $region12: #{tpu_custom_call.1} parent=1 // pred_region
      _
    $region13: #{tpu_custom_call.1} parent=1 // pred_fallthru
      _
    // Predicated region
    $region14: #{tpu_custom_call.1} parent=1 // pred_check
      _
    $region15: #{tpu_custom_call.1} parent=1 // pred_check_branch
      %26 = sbr.rel (0) target = $region17
    $region16: #{tpu_custom_call.1} parent=1 // pred_region
      _
    $region17: #{tpu_custom_call.1} parent=1 // pred_fallthru
      _
    // Predicated region
    $region18: #{tpu_custom_call.1} parent=1 // pred_check
      _
    $region19: #{tpu_custom_call.1} parent=1 // pred_check_branch
      %28 = sbr.rel (0) target = $region21
    $region20: #{tpu_custom_call.1} parent=1 // pred_region
      _
    $region21: #{tpu_custom_call.1} parent=1 // pred_fallthru
      _
    // Predicated region
    $region22: #{tpu_custom_call.1} parent=1 // pred_check
      _
    $region23: #{tpu_custom_call.1} parent=1 // pred_check_branch
      %30 = sbr.rel (0) target = $region25
    $region24: #{tpu_custom_call.1} parent=1 // pred_region
      _
    $region25: #{tpu_custom_call.1} parent=1 // pred_fallthru
      _
    // Predicated region
    $region26: #{tpu_custom_call.1} parent=1 // pred_check
      _
    $region27: #{tpu_custom_call.1} parent=1 // pred_check_branch
      %32 = sbr.rel (0) target = $region29
    $region28: #{tpu_custom_call.1} parent=1 // pred_region
      _
    $region29: #{tpu_custom_call.1} parent=1 // pred_fallthru
      _
    // Predicated region
    $region30: #{tpu_custom_call.1} parent=1 // pred_check
      _
    $region31: #{tpu_custom_call.1} parent=1 // pred_check_branch
      %34 = sbr.rel (0) target = $region33
    $region32: #{tpu_custom_call.1} parent=1 // pred_region
      _
    $region33: #{tpu_custom_call.1} parent=1 // pred_fallthru
      _
    %p36 = scmp.eq.s32.totalorder 0, 0
    // Predicated region
    $region34: #{tpu_custom_call.1} parent=1 // pred_check
      %p37 = pneg %p36
    $region35: #{tpu_custom_call.1} parent=1 // pred_check_branch
      %39 = sbr.rel (%p37) target = $region37
    $region36: #{tpu_custom_call.1} parent=1 // pred_region
      %vm40 = vcmask 7168
      %41 = vst.msk [vmem:[#allocation2] sm:$0xff] %vm40, -inf
      %42 = vst.msk [vmem:[#allocation3] sm:$0xff] %vm40, 0.0
      %43 = vst.msk [vmem:[#allocation4] sm:$0xff] %vm40, 0.0
      %vm44 = vcmask 57344
      %45 = vst.msk [vmem:[#allocation5] sm:$0x1] %vm44, 0.0
    $region37: #{tpu_custom_call.1} parent=1 // pred_fallthru
      _
    %s46 = sld [smem:[#allocation6]]
    %v47 = vld [vmem:[%s1] sm:$0xf]
    %v48 = vld [vmem:[%s2] sm:$0xf]
    %vm49 = vcmask 261120
    %v51 = vsel %vm49, %v47, 0
    %v54 = vsel %vm49, %v48, 0
    %56 = vmatpush.bf16.xpose.msra.mxu0 0
    %57 = vmatpush.bf16.xpose.msra.mxu0 0
    %58 = vmatpush.bf16.xpose.msra.mxu0 0
    %59 = vmatpush.bf16.xpose.msra.mxu0 0
    %60 = vmatpush.bf16.xpose.msra.mxu0 0
    %61 = vmatpush.bf16.xpose.msra.mxu0 0
    %62 = vmatpush.bf16.xpose.msra.mxu0 0
    %63 = vmatpush.bf16.xpose.msra.mxu0 %v54
    %64 = vmatmul.bf16.gmra.mxu0 %v51
    %v65 = vpop.f32.mrf.mxu0
    %v66 = vadd.f32 0.0, %v65
    %v67 = vpop.f32.mrf.mxu0
    %68 = vdwg.mxu0
    %v69 = vstv %s46
    %v70 = vmul.f32 %v69, %v66
    %v71 = vld [vmem:[%s3] sm:$0xff]
    %v72 = vld [vmem:[%s4] sm:$0x1]
    %v73 = vld [vmem:[%s6] sm:$0x1]
    %74 = vset.pattern.permute.xlu0 0
    %75 = vperm.xlu0 %74, %v71
    %v76 = vpop.permute.xlu0 %75
    %v77 = vperm.slane %v72, 0
    %vm78 = vcmp.eq.s32.totalorder %v76, %v77
    %v79 = vsel %vm78, %v70, 0.0
    %v80 = vld [vmem:[#allocation4] sm:$0xff]
    %vm81 = vcmask 64512
    %v82 = vsel %vm81, %v79, 0.0
    %83 = vadd.xlane.f32.xlu0 %v82
    %v84 = vpop.xlane.xlu0 %83
    %v85 = vadd.f32 %v80, %v84
    %vm86 = vcmask 7168
    %87 = vst.msk [vmem:[#allocation4] sm:$0xff] %vm86, %v85
    %v88 = vld [vmem:[#allocation5] sm:$0x1]
    %v89 = vrot.slane %v82, 4
    %v90 = vadd.f32 %v82, %v89
    %v91 = vrot.slane %v90, 2
    %v92 = vadd.f32 %v90, %v91
    %v93 = vrot.slane %v92, 1
    %v94 = vadd.f32 %v92, %v93
    %v95 = vmul.f32 %v94, %v73
    %v96 = vadd.f32 %v88, %v95
    %vm97 = vcmask 57344
    %98 = vst.msk [vmem:[#allocation5] sm:$0x1] %vm97, %v96
    %v99 = vld [vmem:[#allocation2] sm:$0xff]
    %v100 = vsel %vm81, %v70, -inf
    %101 = vmax.xlane.f32.xlu0 %v100
    %v102 = vpop.xlane.xlu0 %101
    %v103 = vmax.f32 %v99, %v102
    %105 = vset.pattern.permute.xlu0 0
    %106 = vperm.xlu0 %105, %v103
    %v107 = vpop.permute.xlu0 %106
    %v109 = vsub.f32 %v70, %v107
    %v110 = vmul.f32 %v109, 1.442695
    %v111 = vpow.pop %v110
    %v112 = vld [vmem:[#allocation3] sm:$0xff]
    %v113 = vsub.f32 %v99, %v103
    %v114 = vmul.f32 %v113, 1.442695
    %v115 = vpow.pop %v114
    %v116 = vmul.f32 %v112, %v115
    %v117 = vsel %vm81, %v111, 0.0
    %118 = vadd.xlane.f32.xlu0 %v117
    %v119 = vpop.xlane.xlu0 %118
    %v120 = vadd.f32 %v116, %v119
    %121 = vst.msk [vmem:[#allocation3] sm:$0xff] %vm86, %v120
    %122 = vst.msk [vmem:[#allocation2] sm:$0xff] %vm86, %v103
    %v123 = vrot.slane %v100, 4
    %v124 = vmax.f32 %v100, %v123
    %v125 = vrot.slane %v124, 2
    %v126 = vmax.f32 %v124, %v125
    %v127 = vrot.slane %v126, 1
    %v128 = vmax.f32 %v126, %v127
    %v129 = vsub.f32 %v70, %v128
    %v130 = vmul.f32 %v129, 1.442695
    %v131 = vpow.pop %v130
    %v132 = vsel %vm81, %v131, 0.0
    %v133 = vrot.slane %v132, 4
    %v134 = vadd.f32 %v132, %v133
    %v135 = vrot.slane %v134, 2
    %v136 = vadd.f32 %v134, %v135
    %v137 = vrot.slane %v136, 1
    %v138 = vadd.f32 %v136, %v137
    %139 = vst.msk [vmem:[#allocation9] sm:$0x1] %vm97, %v128
    %140 = vst.msk [vmem:[#allocation11] sm:$0x1] %vm97, %v138
    // Predicated region
    $region38: #{tpu_custom_call.1} parent=1 // pred_check
      %p141 = pneg %p36
    $region39: #{tpu_custom_call.1} parent=1 // pred_check_branch
      %143 = sbr.rel (%p141) target = $region41
    $region40: #{tpu_custom_call.1} parent=1 // pred_region
      %v144 = vld [vmem:[#allocation2] sm:$0xff]
      %v145 = vld [vmem:[#allocation3] sm:$0xff]
      %v146 = vlog2.pop %v145
      %v147 = vmul.f32 %v146, 0.6931472
      %v148 = vadd.f32 %v144, %v147
      %v149 = vld [vmem:[%s7] sm:$0xff]
      %v150 = vmul.f32 %v148, %v149
      %v151 = vsel %vm86, %v150, 0.0
      %152 = vadd.xlane.f32.xlu0 %v151
      %v153 = vpop.xlane.xlu0 %152
      %v154 = vrot.slane %v153, 4
      %v155 = vadd.f32 %v153, %v154
      %v156 = vrot.slane %v155, 2
      %v157 = vadd.f32 %v155, %v156
      %v158 = vrot.slane %v157, 1
      %v159 = vadd.f32 %v157, %v158
      %s160 = vtos %v159
      %v161 = vld [vmem:[#allocation4] sm:$0xff]
      %v162 = vld [vmem:[%s5] sm:$0xff]
      %v163 = vmul.f32 %v161, %v162
      %v164 = vsel %vm86, %v163, 0.0
      %165 = vadd.xlane.f32.xlu0 %v164
      %v166 = vpop.xlane.xlu0 %165
      %v167 = vrot.slane %v166, 4
      %v168 = vadd.f32 %v166, %v167
      %v169 = vrot.slane %v168, 2
      %v170 = vadd.f32 %v168, %v169
      %v171 = vrot.slane %v170, 1
      %v172 = vadd.f32 %v170, %v171
      %s173 = vtos %v172
      %s174 = ssub.f32 %s160, %s173
      %v175 = vld [vmem:[#allocation5] sm:$0x1]
      %v176 = vsel %vm97, %v175, 0.0
      %177 = vadd.xlane.f32.xlu0 %v176
      %v178 = vpop.xlane.xlu0 %177
      %v179 = vrot.slane %v178, 4
      %v180 = vadd.f32 %v178, %v179
      %v181 = vrot.slane %v180, 2
      %v182 = vadd.f32 %v180, %v181
      %v183 = vrot.slane %v182, 1
      %v184 = vadd.f32 %v182, %v183
      %s185 = vtos %v184
      %s186 = ssub.f32 %s174, %s185
      %v187 = vstv %s186
      %vm188 = vcmask 0
      %189 = vst.msk [vmem:[#allocation7] sm:$0x1] %vm188, %v187
    $region41: #{tpu_custom_call.1} parent=1 // pred_fallthru
      _
    // Predicated region
    $region42: #{tpu_custom_call.1} parent=1 // pred_check
      _
    $region43: #{tpu_custom_call.1} parent=1 // pred_check_branch
      %191 = sbr.rel (0) target = $region45
    $region44: #{tpu_custom_call.1} parent=1 // pred_region
      %193 = vsyncadd [#allocation8], 0
      %s195 = sshll.u32 [#allocation7], 4
      %s196 = int_to_ptr.vmem [resolvable:$true] %s195
      %s197 = sshll.u32 %s8, 4
      %s198 = int_to_ptr.hbm [resolvable:$true] %s197
      %200 = dma.vmem_to_hbm [thread:$0]  %s196, 16, %s198, [#allocation8]
    $region45: #{tpu_custom_call.1} parent=1 // pred_fallthru
      _
    // Predicated region
    $region46: #{tpu_custom_call.1} parent=1 // pred_check
      _
    $region47: #{tpu_custom_call.1} parent=1 // pred_check_branch
      %202 = sbr.rel (0) target = $region49
    $region48: #{tpu_custom_call.1} parent=1 // pred_region
      %204 = vsyncadd [#allocation10], 0
      %s206 = sshll.u32 [#allocation9], 4
      %s207 = int_to_ptr.vmem [resolvable:$true] %s206
      %s208 = sshll.u32 %s9, 4
      %s209 = int_to_ptr.hbm [resolvable:$true] %s208
      %211 = dma.vmem_to_hbm [thread:$0]  %s207, 16, %s209, [#allocation10]
    $region49: #{tpu_custom_call.1} parent=1 // pred_fallthru
      _
    // Predicated region
    $region50: #{tpu_custom_call.1} parent=1 // pred_check
      _
    $region51: #{tpu_custom_call.1} parent=1 // pred_check_branch
      %213 = sbr.rel (0) target = $region53
    $region52: #{tpu_custom_call.1} parent=1 // pred_region
      %215 = vsyncadd [#allocation10], 0
      %s217 = sshll.u32 [#allocation11], 4
      %s218 = int_to_ptr.vmem [resolvable:$true] %s217
      %s219 = sshll.u32 %s10, 4
      %s220 = int_to_ptr.hbm [resolvable:$true] %s219
      %222 = dma.vmem_to_hbm [thread:$0]  %s218, 16, %s220, [#allocation10]
    $region53: #{tpu_custom_call.1} parent=1 // pred_fallthru
      _
    // Predicated region
    $region54: #{tpu_custom_call.1} parent=1 // pred_check
      _
    $region55: #{tpu_custom_call.1} parent=1 // pred_check_branch
      %224 = sbr.rel (0) target = $region57
    $region56: #{tpu_custom_call.1} parent=1 // pred_region
      %226 = dma.done [#allocation8], 16
    $region57: #{tpu_custom_call.1} parent=1 // pred_fallthru
      _
    // Predicated region
    $region58: #{tpu_custom_call.1} parent=1 // pred_check
      _
    $region59: #{tpu_custom_call.1} parent=1 // pred_check_branch
      %228 = sbr.rel (0) target = $region61
    $region60: #{tpu_custom_call.1} parent=1 // pred_region
      %230 = dma.done [#allocation10], 16
    $region61: #{tpu_custom_call.1} parent=1 // pred_fallthru
      _
    // Predicated region
    $region62: #{tpu_custom_call.1} parent=1 // pred_check
      _
    $region63: #{tpu_custom_call.1} parent=1 // pred_check_branch
      %232 = sbr.rel (0) target = $region65
    $region64: #{tpu_custom_call.1} parent=1 // pred_region
      %234 = dma.done [#allocation10], 16
    $region65: #{tpu_custom_call.1} parent=1 // pred_fallthru
      _
    %235 = vsyncpa [#allocation8], 1
    %236 = vsyncpa [#allocation10], 1

</llo_original>
